<compile_context>
chip_gen: v7x
topology: tpu7x:2x2x1
jax: 0.10.0
libtpu: 0.0.40
codegen_flags: <defaults>
</compile_context>

<pallas_src>
from typing import Optional

import jax
import jax.numpy as jnp
from jax.experimental import pallas as pl
from jax.experimental.pallas import tpu as pltpu


def _copy_kernel(y_ref, o_ref):
    # Pure pass-through: the module returns `y` unchanged.
    o_ref[...] = y_ref[...]


_TILE_ROWS = 512          # rows per tile  -> <= ~1 MiB per buffer for f32
_LANE_WIDTHS = (512, 256, 128)   # preferred lane-dense widths (multiples of 128)


def _tiled_copy(y2d: jnp.ndarray) -> jnp.ndarray:
    """Pipelined HBM->HBM identity copy of a 2-D array."""
    rows, cols = y2d.shape
    tr = min(_TILE_ROWS, rows)               # tr==rows (full dim) or tr%8==0
    grid = (pl.cdiv(rows, tr),)
    nbytes = int(y2d.size) * y2d.dtype.itemsize
    return pl.pallas_call(
        _copy_kernel,
        out_shape=jax.ShapeDtypeStruct(y2d.shape, y2d.dtype),
        grid=grid,
        in_specs=[pl.BlockSpec((tr, cols), lambda i: (i, 0))],
        out_specs=pl.BlockSpec((tr, cols), lambda i: (i, 0)),
        compiler_params=pltpu.CompilerParams(
            dimension_semantics=("parallel",)),
        cost_estimate=pl.CostEstimate(
            flops=0, transcendentals=0, bytes_accessed=2 * nbytes),
    )(y2d)


def keyword_block_forward(x: Optional[jnp.ndarray],
                          y: Optional[jnp.ndarray] = None):
    """Pallas equivalent of KeywordBlock.forward: returns y (x is ignored).

    NOTE: the zero-cost implementation is simply `return y`; the kernel below
    only exists because a Pallas kernel is contractually required, so it is
    made as cheap as a copy can be (lane-dense tiles, pipelined DMA).
    """
    del x  # KeywordBlock never reads x.
    if y is None:
        return None

    orig_shape = y.shape
    total = int(y.size)
    if total == 0:
        return y  # degenerate: nothing to copy

    # Lane-dense re-layout: fold the flattened tensor into (rows, W) with W a
    # multiple of 128 so the output tile is full-lane-width.  The reshape is
    # contiguous / metadata-only.
    width = None
    for cand in _LANE_WIDTHS:
        if total % cand == 0:
            width = cand
            break

    if width is not None:
        y2d = y.reshape(total // width, width)
    elif y.ndim >= 2:
        # Fallback for odd sizes: keep the natural last dim as lanes.
        y2d = y.reshape(-1, orig_shape[-1])
    else:
        y2d = y.reshape(1, -1)

    out2d = _tiled_copy(y2d)
    return out2d.reshape(orig_shape)


if __name__ == "__main__":
    # KeywordBlock.__init__ takes (in_channels, out_channels, downsample,
    # block_index) but allocates no parameters — nothing to initialize.
    key = jax.random.PRNGKey(0)
    kx, ky, ky2 = jax.random.split(key, 3)

    # Small NCHW shapes consistent with a conv-stage block.
    x = jax.random.normal(kx, (2, 4, 16, 16), dtype=jnp.float32)
    y = jax.random.normal(ky, (2, 8, 8, 8), dtype=jnp.float32)

    out = keyword_block_forward(x, y)
    out = jax.block_until_ready(out)
    assert out.shape == y.shape and out.dtype == y.dtype
    assert bool(jnp.all(out == y))

    # Slightly larger y to exercise the multi-tile grid path (rows > 512).
    y_big = jax.random.normal(ky2, (4, 16, 64, 64), dtype=jnp.float32)
    out_big = jax.block_until_ready(keyword_block_forward(x, y_big))
    assert out_big.shape == y_big.shape and bool(jnp.all(out_big == y_big))

    # y=None path mirrors PyTorch (returns None).
    assert keyword_block_forward(x, None) is None

    print("KERNEL_OK")
</pallas_src>

<mosaic_0001>
module attributes {stable_mosaic.version = 11 : i64} {
  func.func @_copy_kernel(%arg0: i32, %arg1: memref<2x512xf32, #tpu.memory_space<vmem>>, %arg2: memref<2x512xf32, #tpu.memory_space<vmem>>) attributes {dimension_semantics = [#tpu.dimension_semantics<parallel>], iteration_bounds = array<i64: 1>, scalar_prefetch = 0 : i64, scratch_operands = 0 : i64, tpu.core_type = #tpu.core_type<tc>, window_params = [{transform_indices = @transform_0, window_bounds = array<i64: 2, 512>}, {transform_indices = @transform_1, window_bounds = array<i64: 2, 512>}]} {
    %c0 = arith.constant 0 : index
    %c0_0 = arith.constant 0 : index
    %0 = vector.load %arg1[%c0, %c0_0] : memref<2x512xf32, #tpu.memory_space<vmem>>, vector<2x512xf32>
    %c0_1 = arith.constant 0 : index
    %c0_2 = arith.constant 0 : index
    %1 = vector.load %arg2[%c0_1, %c0_2] : memref<2x512xf32, #tpu.memory_space<vmem>>, vector<2x512xf32>
    tpu.vector_store %arg2[%c0_1, %c0_2], %0 {strides = array<i32>} : memref<2x512xf32, #tpu.memory_space<vmem>>, vector<2x512xf32>,
    return
  }
  func.func @transform_0(%arg0: i32) -> (i32, i32) {
    %c0_i32 = arith.constant 0 : i32
    %c0_i32_0 = arith.constant 0 : i32
    return %arg0, %c0_i32 : i32, i32
  }
  func.func @transform_1(%arg0: i32) -> (i32, i32) {
    %c0_i32 = arith.constant 0 : i32
    %c0_i32_0 = arith.constant 0 : i32
    return %arg0, %c0_i32 : i32, i32
  }
}

</mosaic_0001>

<llo_original>
// kernel: tpu_custom_call.1
$region0: #{tpu_custom_call.1}
  #allocation0 [shape = 'u32[]', space=smem, size = 0x4, offset = 0x4, fixed_abs, tag = 'smem constant byte address 0x4 - core index']
  #allocation1 [shape = 'u32[144,128]{1,0:T(1,128)}', space=vmem, size = 0x12000, scoped, tag = 'internal scratch']
  %s0 = inlined_call_operand.hbm [shape: f32[2,512], index: 0, kind: input, shape index: {}]
  %s1 = inlined_call_operand.hbm [shape: f32[2,512], index: 1, kind: output, shape index: {}]
  %s2 = sld [smem:[#allocation0]]
  $region18: #{tpu_custom_call.1} parent=0
    _
  %s4 = ssub.s32 1, %s2
  %s5 = scalar_select 0, %s4, %s2
  $region1: #{tpu_custom_call.1} parent=0
    #allocation2 [shape = 'u8[4096]{0}', space=vmem, size = 0x1000, scoped, tag = 'input window, operand 0, single buffered']
    #allocation3 [shape = 's32[1]{0}', space=sflag, size = 0x4, scoped, tag = 'scoped memory for tpu_custom_call.1']
    #allocation4 [shape = 's32[1]{0}', space=sflag, size = 0x4, scoped, tag = 'scoped memory for tpu_custom_call.1']
    #allocation5 [shape = 'u8[4096]{0}', space=vmem, size = 0x1000, scoped, tag = 'output window, operand 0, single buffered']
    %6 = vsyncpa [#allocation3], 0
    %7 = vsyncpa [#allocation4], 0
    // Predicated region
    $region2: #{tpu_custom_call.1} parent=1 // pred_check
      _
    $region3: #{tpu_custom_call.1} parent=1 // pred_check_branch
      %9 = sbr.rel (0) target = $region5
    $region4: #{tpu_custom_call.1} parent=1 // pred_region
      %s11 = ssub.s32 128, 128
      %12 = vsyncadd [#allocation3], %s11
      %s14 = sshll.u32 [#allocation2], 4
      %s15 = int_to_ptr.vmem [resolvable:$true] %s14
      %17 = dma.hbm_to_vmem [thread:$0]  %s0, 128, %s15, [#allocation3]
    $region5: #{tpu_custom_call.1} parent=1 // pred_fallthru
      _
    // Predicated region
    $region6: #{tpu_custom_call.1} parent=1 // pred_check
      _
    $region7: #{tpu_custom_call.1} parent=1 // pred_check_branch
      %19 = sbr.rel (0) target = $region9
    $region8: #{tpu_custom_call.1} parent=1 // pred_region
      %20 = dma.done [#allocation3], 128
    $region9: #{tpu_custom_call.1} parent=1 // pred_fallthru
      _
    %v21 = vld [vmem:[#allocation2] sm:$0xff]
    %22 = vst [vmem:[#allocation5] sm:$0xff] %v21
    // Predicated region
    $region10: #{tpu_custom_call.1} parent=1 // pred_check
      _
    $region11: #{tpu_custom_call.1} parent=1 // pred_check_branch
      %24 = sbr.rel (0) target = $region13
    $region12: #{tpu_custom_call.1} parent=1 // pred_region
      %s26 = ssub.s32 128, 128
      %27 = vsyncadd [#allocation4], %s26
      %s29 = sshll.u32 [#allocation5], 4
      %s30 = int_to_ptr.vmem [resolvable:$true] %s29
      %32 = dma.vmem_to_hbm [thread:$0]  %s30, 128, %s1, [#allocation4]
    $region13: #{tpu_custom_call.1} parent=1 // pred_fallthru
      _
    // Predicated region
    $region14: #{tpu_custom_call.1} parent=1 // pred_check
      _
    $region15: #{tpu_custom_call.1} parent=1 // pred_check_branch
      %34 = sbr.rel (0) target = $region17
    $region16: #{tpu_custom_call.1} parent=1 // pred_region
      %35 = dma.done [#allocation4], 128
    $region17: #{tpu_custom_call.1} parent=1 // pred_fallthru
      _
    %36 = vsyncpa [#allocation3], 1
    %37 = vsyncpa [#allocation4], 1

</llo_original>
